<compile_context>
chip_gen: v5e
topology: v5e:2x2
jax: 0.10.0
libtpu: 0.0.40
codegen_flags: <defaults>
</compile_context>

<pallas_src>
import functools

import jax
import jax.numpy as jnp
import numpy as np
from jax.experimental import pallas as pl
from jax.experimental.pallas import tpu as pltpu


def _round_up(x, m):
    return ((x + m - 1) // m) * m


# ----------------------------- Pallas kernel --------------------------------
def _vid_encoder_kernel(x_ref, w1_ref, b1_ref, wh_ref, bh_ref, eps_ref,
                        slab_ref, kl_ref, *, d_pad, tile_n, n_valid):
    """Fused encoder1(MLP) -> fused mu/logvar heads -> reparameterize -> KL.

    x_ref   : (TILE_N, F)        bf16 input tokens (grid-tiled over N)
    w1_ref  : (F, H_pad)         bf16, zero-padded hidden dim
    b1_ref  : (1, H_pad)         f32
    wh_ref  : (H_pad, 2*D_pad)   bf16, [Wmu | Wlv] zero-padded
    bh_ref  : (1, 2*D_pad)       f32, [bmu | blv] zero-padded
    eps_ref : (TILE_N, D_pad) or (1, D_pad)  f32 (broadcasts; zeros at inference)
    slab_ref: (TILE_N, 3*D_pad)  f32 packed output [mu | logvar | z]
    kl_ref  : (8, 128)           f32 per-tile KL partial (broadcast-filled)
    """
    # encoder1: Linear + ReLU (final_nonlinearity=True, norm='none'); f32 accumulate
    h = jnp.dot(x_ref[...], w1_ref[...],
                preferred_element_type=jnp.float32) + b1_ref[...]
    h = jnp.maximum(h, 0.0)                                   # (TILE_N, H_pad)

    # fused mu/logvar heads: a single MXU matmul, then lane-slice the result
    ml = jnp.dot(h.astype(wh_ref.dtype), wh_ref[...],
                 preferred_element_type=jnp.float32) + bh_ref[...]
    mu = ml[:, :d_pad]                                        # (TILE_N, D_pad)
    lv = ml[:, d_pad:]                                        # (TILE_N, D_pad)

    # reparameterize: z = eps * exp(0.5*logvar) + mu ; reuse exp(lv) = std*std
    std = jnp.exp(0.5 * lv)
    z = eps_ref[...] * std + mu

    # KL = -0.5 * sum(1 + logvar - mu^2 - exp(logvar)); padded feature columns
    # contribute exactly 0 (mu=lv=0), padded rows are masked out below.
    kl_elem = -0.5 * (1.0 + lv - mu * mu - std * std)
    row0 = pl.program_id(0) * tile_n
    rows = jax.lax.broadcasted_iota(jnp.int32, (tile_n, 1), 0) + row0
    kl_elem = jnp.where(rows < n_valid, kl_elem, 0.0)
    kl_tile = jnp.sum(kl_elem)

    # lane-dense packed output slab: three 128-aligned unmasked stores
    slab_ref[:, :d_pad] = mu
    slab_ref[:, d_pad:2 * d_pad] = lv
    slab_ref[:, 2 * d_pad:] = z

    kl_ref[...] = jnp.full((8, 128), kl_tile, jnp.float32)


# ------------------------------ JAX wrapper ----------------------------------
class VidEncoderPallas:
    """JAX/Pallas port of cvp.vid_encoder.VidEncoder (hidden_dims=(H,), relu, no norm)."""

    LANE = 128

    def __init__(self, input_dim, output_dim, long_term, hidden_dims, key,
                 tile_n=256):
        assert hidden_dims is not None and len(hidden_dims) == 1, \
            "only the single-hidden-layer MLP config is implemented"
        self.input_dim = input_dim
        self.output_dim = output_dim
        self.long_term = long_term
        self.training = True
        self.tile_n = int(tile_n)
        assert self.tile_n % 8 == 0

        in_feat = input_dim * 2
        hidden = hidden_dims[0]
        self.in_feat = in_feat
        self.hidden = hidden
        self.h_pad = _round_up(hidden, self.LANE)
        self.d_pad = _round_up(output_dim, self.LANE)

        k1, k2, k3, k4, k5, k6 = jax.random.split(key, 6)

        def _linear_init(kw, kb, fan_in, fan_out):
            # PyTorch-like uniform(-1/sqrt(fan_in), 1/sqrt(fan_in))
            bound = 1.0 / np.sqrt(fan_in)
            w = jax.random.uniform(kw, (fan_in, fan_out), jnp.float32, -bound, bound)
            b = jax.random.uniform(kb, (1, fan_out), jnp.float32, -bound, bound)
            return w, b

        # unpadded f32 parameters (kept for the pure-JAX reference)
        self.w1_f32, self.b1_f32 = _linear_init(k1, k2, in_feat, hidden)
        self.wmu_f32, self.bmu_f32 = _linear_init(k3, k4, hidden, output_dim)
        self.wlv_f32, self.blv_f32 = _linear_init(k5, k6, hidden, output_dim)

        # padded, fused, bf16 kernel operands (built once; zero columns/rows
        # contribute exactly 0 to matmuls and to the KL)
        d, dp, hp = output_dim, self.d_pad, self.h_pad
        w1_p = jnp.zeros((in_feat, hp), jnp.float32).at[:, :hidden].set(self.w1_f32)
        b1_p = jnp.zeros((1, hp), jnp.float32).at[:, :hidden].set(self.b1_f32)
        wh_p = (jnp.zeros((hp, 2 * dp), jnp.float32)
                .at[:hidden, :d].set(self.wmu_f32)
                .at[:hidden, dp:dp + d].set(self.wlv_f32))
        bh_p = (jnp.zeros((1, 2 * dp), jnp.float32)
                .at[:, :d].set(self.bmu_f32)
                .at[:, dp:dp + d].set(self.blv_f32))
        self.w1_p = w1_p.astype(jnp.bfloat16)   # bf16 MXU operands
        self.wh_p = wh_p.astype(jnp.bfloat16)
        self.b1_p = b1_p                        # f32 bias added post-matmul
        self.bh_p = bh_p

    # ------------------------------------------------------------------ kernel
    def _call_kernel(self, x_bf16, eps, n_valid, sampling):
        n_pad, f = x_bf16.shape
        tn, hp, dp = self.tile_n, self.h_pad, self.d_pad
        num_tiles = n_pad // tn

        kernel = functools.partial(_vid_encoder_kernel,
                                   d_pad=dp, tile_n=tn, n_valid=int(n_valid))

        if sampling:
            eps_spec = pl.BlockSpec((tn, dp), lambda i: (i, 0))
        else:
            # (1, D_pad) zero block broadcast inside the kernel -> z == mu,
            # no N*D HBM->VMEM traffic on the inference path.
            eps_spec = pl.BlockSpec((1, dp), lambda i: (0, 0))

        cost = pl.CostEstimate(
            flops=2 * n_pad * (f * hp + hp * 2 * dp),
            transcendentals=n_pad * dp,
            bytes_accessed=(x_bf16.size * 2 + eps.size * 4
                            + self.w1_p.size * 2 + self.wh_p.size * 2
                            + (self.b1_p.size + self.bh_p.size) * 4
                            + n_pad * 3 * dp * 4 + num_tiles * 8 * 128 * 4))

        grid_spec = pltpu.PrefetchScalarGridSpec(
            num_scalar_prefetch=0,
            grid=(num_tiles,),
            in_specs=[
                pl.BlockSpec((tn, f), lambda i: (i, 0)),          # x tile
                pl.BlockSpec((f, hp), lambda i: (0, 0)),          # W1 (resident)
                pl.BlockSpec((1, hp), lambda i: (0, 0)),          # b1
                pl.BlockSpec((hp, 2 * dp), lambda i: (0, 0)),     # fused heads W
                pl.BlockSpec((1, 2 * dp), lambda i: (0, 0)),      # fused heads b
                eps_spec,                                          # eps
            ],
            out_specs=(
                pl.BlockSpec((tn, 3 * dp), lambda i: (i, 0)),     # [mu|lv|z] slab
                pl.BlockSpec((8, 128), lambda i: (i, 0)),         # per-tile KL
            ),
        )

        fn = pl.pallas_call(
            kernel,
            out_shape=(jax.ShapeDtypeStruct((n_pad, 3 * dp), jnp.float32),
                       jax.ShapeDtypeStruct((num_tiles * 8, 128), jnp.float32)),
            grid_spec=grid_spec,
            compiler_params=pltpu.CompilerParams(
                dimension_semantics=("parallel",),
                vmem_limit_bytes=32 * 1024 * 1024),
            cost_estimate=cost,
        )
        return fn(x_bf16, self.w1_p, self.b1_p, self.wh_p, self.bh_p, eps)

    # ------------------------------------------------------------------ public
    def forward(self, input_feat, key=None, sample=True):
        """
        :param input_feat: (Dt, V, 2*input_dim) encoded video features
        :return: obj_z (Dt, V, D), kl_loss (scalar), ori_z = (mu, logvar)
        """
        dt, v, f = input_feat.shape
        assert f == self.in_feat
        n = dt * v
        d, dp, tn = self.output_dim, self.d_pad, self.tile_n

        x = jnp.reshape(input_feat, (n, f)).astype(jnp.bfloat16)
        n_pad = _round_up(n, tn)
        if n_pad != n:
            x = jnp.pad(x, ((0, n_pad - n), (0, 0)))

        sampling = bool(self.training and sample)
        if sampling:
            if key is None:
                raise ValueError("key required when sampling")
            eps = jax.random.normal(key, (n_pad, dp), jnp.float32)
        else:
            eps = jnp.zeros((1, dp), jnp.float32)

        slab, kl_parts = self._call_kernel(x, eps, n_valid=n, sampling=sampling)

        mu = slab[:n, 0:d]
        logvar = slab[:n, dp:dp + d]
        z = slab[:n, 2 * dp:2 * dp + d]      # == mu when not sampling (eps=0)
        kl_loss = jnp.sum(kl_parts[::8, 0])  # one partial per grid tile

        obj_z = z.reshape(dt, v, d)
        ori_z = (mu.reshape(dt, v, d), logvar.reshape(dt, v, d))
        return obj_z, kl_loss, ori_z

    def no_sample(self, input_feat):
        return self.forward(input_feat, key=None, sample=False)

    # TODO(synk): `_forward` (vid_batch -> input_feat) and `generate_z_from_u`
    # (and hence `batch_sample`) are abstract (NotImplementedError) in the
    # reference module; not faked here.


# ------------------------------ reference check ------------------------------
def _jax_reference(enc, x_f32, eps_f32):
    """Pure-JAX reference mirroring the kernel's bf16-matmul / f32-accumulate math."""
    bf = jnp.bfloat16
    xb = x_f32.astype(bf)
    h = jnp.dot(xb, enc.w1_f32.astype(bf),
                preferred_element_type=jnp.float32) + enc.b1_f32
    h = jnp.maximum(h, 0.0)
    hb = h.astype(bf)
    mu = jnp.dot(hb, enc.wmu_f32.astype(bf),
                 preferred_element_type=jnp.float32) + enc.bmu_f32
    lv = jnp.dot(hb, enc.wlv_f32.astype(bf),
                 preferred_element_type=jnp.float32) + enc.blv_f32
    std = jnp.exp(0.5 * lv)
    z = eps_f32 * std + mu
    kl = -0.5 * jnp.sum(1.0 + lv - mu * mu - std * std)
    return mu, lv, z, kl


if __name__ == "__main__":
    key = jax.random.PRNGKey(0)
    k_param, k_feat, k_eps = jax.random.split(key, 3)

    # Small shapes: Dt=5 timesteps, V=4 objects, input_dim=16 -> feat=32,
    # hidden=32, output_dim=8.  tile_n=16 -> 2-tile grid + row masking exercised.
    input_dim, output_dim, hidden = 16, 8, 32
    Dt, V = 5, 4
    TILE_N = 16

    enc = VidEncoderPallas(input_dim=input_dim, output_dim=output_dim,
                           long_term=True, hidden_dims=(hidden,), key=k_param,
                           tile_n=TILE_N)

    vid_feat = jax.random.normal(k_feat, (Dt, V, input_dim * 2), jnp.float32)

    # training / sampling path
    obj_z, kl_loss, (mu, logvar) = enc.forward(vid_feat, k_eps, sample=True)
    jax.block_until_ready((obj_z, kl_loss, mu, logvar))

    # rebuild the exact eps the kernel used (same key, padded shape, sliced)
    n = Dt * V
    n_pad = _round_up(n, TILE_N)
    eps_full = jax.random.normal(k_eps, (n_pad, enc.d_pad), jnp.float32)
    eps = eps_full[:n, :output_dim]

    x_flat = vid_feat.reshape(n, input_dim * 2)
    mu_r, lv_r, z_r, kl_r = _jax_reference(enc, x_flat, eps)

    tol = dict(atol=2e-2, rtol=2e-2)
    assert np.allclose(np.asarray(mu).reshape(n, -1), np.asarray(mu_r), **tol)
    assert np.allclose(np.asarray(logvar).reshape(n, -1), np.asarray(lv_r), **tol)
    assert np.allclose(np.asarray(obj_z).reshape(n, -1), np.asarray(z_r), **tol)
    assert np.allclose(float(kl_loss), float(kl_r), atol=5e-2, rtol=2e-2)

    # no-sample path: z must equal mu (eps block is zero), KL unchanged
    obj_z_ns, kl_ns, (mu_ns, lv_ns) = enc.no_sample(vid_feat)
    jax.block_until_ready((obj_z_ns, kl_ns))
    assert np.allclose(np.asarray(obj_z_ns), np.asarray(mu_ns), atol=1e-6)
    assert np.allclose(float(kl_ns), float(kl_loss), atol=5e-2, rtol=2e-2)

    print("KERNEL_OK")
</pallas_src>

<mosaic_0001>
module attributes {stable_mosaic.version = 11 : i64} {
  func.func @_vid_encoder_kernel(%arg0: i32, %arg1: memref<16x32xbf16, #tpu.memory_space<vmem>>, %arg2: memref<32x128xbf16, #tpu.memory_space<vmem>>, %arg3: memref<1x128xf32, #tpu.memory_space<vmem>>, %arg4: memref<128x256xbf16, #tpu.memory_space<vmem>>, %arg5: memref<1x256xf32, #tpu.memory_space<vmem>>, %arg6: memref<16x128xf32, #tpu.memory_space<vmem>>, %arg7: memref<16x384xf32, #tpu.memory_space<vmem>>, %arg8: memref<8x128xf32, #tpu.memory_space<vmem>>) attributes {dimension_semantics = [#tpu.dimension_semantics<parallel>], iteration_bounds = array<i64: 2>, scalar_prefetch = 0 : i64, scratch_operands = 0 : i64, tpu.core_type = #tpu.core_type<tc>, window_params = [{transform_indices = @transform_0, window_bounds = array<i64: 16, 32>}, {pipeline_mode = #tpu.pipeline_mode<synchronous>, transform_indices = @transform_1, window_bounds = array<i64: 32, 128>}, {pipeline_mode = #tpu.pipeline_mode<synchronous>, transform_indices = @transform_2, window_bounds = array<i64: 1, 128>}, {pipeline_mode = #tpu.pipeline_mode<synchronous>, transform_indices = @transform_3, window_bounds = array<i64: 128, 256>}, {pipeline_mode = #tpu.pipeline_mode<synchronous>, transform_indices = @transform_4, window_bounds = array<i64: 1, 256>}, {transform_indices = @transform_5, window_bounds = array<i64: 16, 128>}, {transform_indices = @transform_6, window_bounds = array<i64: 16, 384>}, {transform_indices = @transform_7, window_bounds = array<i64: 8, 128>}]} {
    %c0 = arith.constant 0 : index
    %c0_0 = arith.constant 0 : index
    %0 = vector.load %arg1[%c0, %c0_0] : memref<16x32xbf16, #tpu.memory_space<vmem>>, vector<16x32xbf16>
    %c0_1 = arith.constant 0 : index
    %c0_2 = arith.constant 0 : index
    %1 = vector.load %arg2[%c0_1, %c0_2] : memref<32x128xbf16, #tpu.memory_space<vmem>>, vector<32x128xbf16>
    %cst = arith.constant dense<0.000000e+00> : vector<16x128xf32>
    %2 = tpu.matmul %0, %1, %cst {dimension_numbers = #tpu.dot_dimension_numbers<[1], [0], [0], [1], [0, 0, 1, 1], [], []>} : vector<16x32xbf16>, vector<32x128xbf16>, vector<16x128xf32> -> vector<16x128xf32>
    %c0_3 = arith.constant 0 : index
    %c0_4 = arith.constant 0 : index
    %3 = vector.load %arg3[%c0_3, %c0_4] : memref<1x128xf32, #tpu.memory_space<vmem>>, vector<1x128xf32>
    %4 = vector.broadcast %3 : vector<1x128xf32> to vector<16x128xf32>
    %5 = arith.addf %2, %4 : vector<16x128xf32>
    %cst_5 = arith.constant 0.000000e+00 : f32
    %6 = vector.broadcast %cst_5 : f32 to vector<16x128xf32>
    %7 = arith.maximumf %5, %6 : vector<16x128xf32>
    %8 = arith.truncf %7 : vector<16x128xf32> to vector<16x128xbf16>
    %c0_6 = arith.constant 0 : index
    %c0_7 = arith.constant 0 : index
    %9 = vector.load %arg4[%c0_6, %c0_7] : memref<128x256xbf16, #tpu.memory_space<vmem>>, vector<128x256xbf16>
    %cst_8 = arith.constant dense<0.000000e+00> : vector<16x256xf32>
    %10 = tpu.matmul %8, %9, %cst_8 {dimension_numbers = #tpu.dot_dimension_numbers<[1], [0], [0], [1], [0, 0, 1, 1], [], []>} : vector<16x128xbf16>, vector<128x256xbf16>, vector<16x256xf32> -> vector<16x256xf32>
    %c0_9 = arith.constant 0 : index
    %c0_10 = arith.constant 0 : index
    %11 = vector.load %arg5[%c0_9, %c0_10] : memref<1x256xf32, #tpu.memory_space<vmem>>, vector<1x256xf32>
    %12 = vector.broadcast %11 : vector<1x256xf32> to vector<16x256xf32>
    %13 = arith.addf %10, %12 : vector<16x256xf32>
    %14 = vector.extract_strided_slice %13 {offsets = [0, 0], sizes = [16, 128], strides = [1, 1]} : vector<16x256xf32> to vector<16x128xf32>
    %15 = vector.extract_strided_slice %13 {offsets = [0, 128], sizes = [16, 128], strides = [1, 1]} : vector<16x256xf32> to vector<16x128xf32>
    %cst_11 = arith.constant 5.000000e-01 : f32
    %16 = vector.broadcast %cst_11 : f32 to vector<16x128xf32>
    %17 = arith.mulf %16, %15 : vector<16x128xf32>
    %18 = math.exp %17 : vector<16x128xf32>
    %c0_12 = arith.constant 0 : index
    %c0_13 = arith.constant 0 : index
    %19 = vector.load %arg6[%c0_12, %c0_13] : memref<16x128xf32, #tpu.memory_space<vmem>>, vector<16x128xf32>
    %20 = arith.mulf %19, %18 : vector<16x128xf32>
    %21 = arith.addf %20, %14 : vector<16x128xf32>
    %cst_14 = arith.constant 1.000000e+00 : f32
    %22 = vector.broadcast %cst_14 : f32 to vector<16x128xf32>
    %23 = arith.addf %22, %15 : vector<16x128xf32>
    %24 = arith.mulf %14, %14 : vector<16x128xf32>
    %25 = arith.subf %23, %24 : vector<16x128xf32>
    %26 = arith.mulf %18, %18 : vector<16x128xf32>
    %27 = arith.subf %25, %26 : vector<16x128xf32>
    %cst_15 = arith.constant -5.000000e-01 : f32
    %28 = vector.broadcast %cst_15 : f32 to vector<16x128xf32>
    %29 = arith.mulf %28, %27 : vector<16x128xf32>
    %c16_i32 = arith.constant 16 : i32
    %30 = arith.muli %arg0, %c16_i32 : i32
    %31 = tpu.iota {dimensions = array<i32: 0>} : vector<16x1xi32>
    %32 = vector.broadcast %30 : i32 to vector<16x1xi32>
    %33 = arith.addi %31, %32 : vector<16x1xi32>
    %c20_i32 = arith.constant 20 : i32
    %34 = vector.broadcast %c20_i32 : i32 to vector<16x1xi32>
    %35 = arith.cmpi slt, %33, %34 : vector<16x1xi32>
    %cst_16 = arith.constant 0.000000e+00 : f32
    %36 = vector.shape_cast %35 : vector<16x1xi1> to vector<16x1xi1>
    %37 = vector.broadcast %36 : vector<16x1xi1> to vector<16x128xi1>
    %38 = vector.broadcast %cst_16 : f32 to vector<16x128xf32>
    %39 = arith.select %37, %29, %38 : vector<16x128xi1>, vector<16x128xf32>
    %40 = vector.shape_cast %39 : vector<16x128xf32> to vector<1x16x128xf32>
    %cst_17 = arith.constant dense<0.000000e+00> : vector<1xf32>
    %41 = vector.multi_reduction <add>, %40, %cst_17 [1, 2] : vector<1x16x128xf32> to vector<1xf32>
    %42 = vector.shape_cast %41 : vector<1xf32> to vector<1x1x1xf32>
    %43 = vector.extract %42[0, 0, 0] : f32 from vector<1x1x1xf32>
    %c0_18 = arith.constant 0 : index
    %c0_19 = arith.constant 0 : index
    %44 = vector.load %arg7[%c0_18, %c0_19] : memref<16x384xf32, #tpu.memory_space<vmem>>, vector<16x128xf32>
    tpu.vector_store %arg7[%c0_18, %c0_19], %14 {strides = array<i32>} : memref<16x384xf32, #tpu.memory_space<vmem>>, vector<16x128xf32>,
    %c0_20 = arith.constant 0 : index
    %c128 = arith.constant 128 : index
    %45 = vector.load %arg7[%c0_20, %c128] : memref<16x384xf32, #tpu.memory_space<vmem>>, vector<16x128xf32>
    tpu.vector_store %arg7[%c0_20, %c128], %15 {strides = array<i32>} : memref<16x384xf32, #tpu.memory_space<vmem>>, vector<16x128xf32>,
    %c0_21 = arith.constant 0 : index
    %c256 = arith.constant 256 : index
    %46 = vector.load %arg7[%c0_21, %c256] : memref<16x384xf32, #tpu.memory_space<vmem>>, vector<16x128xf32>
    tpu.vector_store %arg7[%c0_21, %c256], %21 {strides = array<i32>} : memref<16x384xf32, #tpu.memory_space<vmem>>, vector<16x128xf32>,
    %47 = vector.broadcast %43 : f32 to vector<8x128xf32>
    %c0_22 = arith.constant 0 : index
    %c0_23 = arith.constant 0 : index
    %48 = vector.load %arg8[%c0_22, %c0_23] : memref<8x128xf32, #tpu.memory_space<vmem>>, vector<8x128xf32>
    tpu.vector_store %arg8[%c0_22, %c0_23], %47 {strides = array<i32>} : memref<8x128xf32, #tpu.memory_space<vmem>>, vector<8x128xf32>,
    return
  }
  func.func @transform_0(%arg0: i32) -> (i32, i32) {
    %c0_i32 = arith.constant 0 : i32
    %c0_i32_0 = arith.constant 0 : i32
    return %arg0, %c0_i32 : i32, i32
  }
  func.func @transform_1(%arg0: i32) -> (i32, i32) {
    %c0_i32 = arith.constant 0 : i32
    %c0_i32_0 = arith.constant 0 : i32
    %c0_i32_1 = arith.constant 0 : i32
    return %c0_i32, %c0_i32_0 : i32, i32
  }
  func.func @transform_2(%arg0: i32) -> (i32, i32) {
    %c0_i32 = arith.constant 0 : i32
    %c0_i32_0 = arith.constant 0 : i32
    %c0_i32_1 = arith.constant 0 : i32
    return %c0_i32, %c0_i32_0 : i32, i32
  }
  func.func @transform_3(%arg0: i32) -> (i32, i32) {
    %c0_i32 = arith.constant 0 : i32
    %c0_i32_0 = arith.constant 0 : i32
    %c0_i32_1 = arith.constant 0 : i32
    return %c0_i32, %c0_i32_0 : i32, i32
  }
  func.func @transform_4(%arg0: i32) -> (i32, i32) {
    %c0_i32 = arith.constant 0 : i32
    %c0_i32_0 = arith.constant 0 : i32
    %c0_i32_1 = arith.constant 0 : i32
    return %c0_i32, %c0_i32_0 : i32, i32
  }
  func.func @transform_5(%arg0: i32) -> (i32, i32) {
    %c0_i32 = arith.constant 0 : i32
    %c0_i32_0 = arith.constant 0 : i32
    return %arg0, %c0_i32 : i32, i32
  }
  func.func @transform_6(%arg0: i32) -> (i32, i32) {
    %c0_i32 = arith.constant 0 : i32
    %c0_i32_0 = arith.constant 0 : i32
    return %arg0, %c0_i32 : i32, i32
  }
  func.func @transform_7(%arg0: i32) -> (i32, i32) {
    %c0_i32 = arith.constant 0 : i32
    %c0_i32_0 = arith.constant 0 : i32
    return %arg0, %c0_i32 : i32, i32
  }
}

</mosaic_0001>

<llo_original>
// kernel: tpu_custom_call.1
$region0: #{tpu_custom_call.1}
  #allocation0 [shape = 'u32[]', space=smem, size = 0x4, offset = 0x4, fixed_abs, tag = 'smem constant byte address 0x4 - core index']
  #allocation1 [shape = 'u32[72,128]{1,0:T(1,128)}', space=vmem, size = 0x9000, scoped, tag = 'internal scratch']
  %s0 = inlined_call_operand.hbm [shape: bf16[32,32], index: 0, kind: input, shape index: {}]
  %s1 = inlined_call_operand.hbm [shape: bf16[32,128], index: 1, kind: input, shape index: {}]
  %s2 = inlined_call_operand.vmem [shape: f32[1,128], index: 2, kind: input, shape index: {}]
  %s3 = inlined_call_operand.hbm [shape: bf16[128,256], index: 3, kind: input, shape index: {}]
  %s4 = inlined_call_operand.vmem [shape: f32[1,256], index: 4, kind: input, shape index: {}]
  %s5 = inlined_call_operand.hbm [shape: f32[32,128], index: 5, kind: input, shape index: {}]
  %s6 = inlined_call_operand.hbm [shape: f32[32,384], index: 6, kind: output, shape index: {0}]
  %s7 = inlined_call_operand.hbm [shape: f32[16,128], index: 7, kind: output, shape index: {1}]
  %8 = xla_tuple %s6, %s7
  %s9 = sld [smem:[#allocation0]]
  $region81: #{tpu_custom_call.1} parent=0
    _
  %s11 = ssub.s32 1, %s9
  %s12 = scalar_select 0, %s11, %s9
  $region1: #{tpu_custom_call.1} parent=0
    #allocation2 [shape = 'u8[8192]{0}', space=vmem, size = 0x2000, scoped, tag = 'input window, operand 0']
    #allocation3 [shape = 's32[2]{0}', space=sflag, size = 0x8, scoped, tag = 'scoped memory for tpu_custom_call.1']
    #allocation4 [shape = 's32[2]{0}', space=sflag, size = 0x8, scoped, tag = 'scoped memory for tpu_custom_call.1']
    #allocation5 [shape = 'u8[8192]{0}', space=vmem, size = 0x2000, scoped, tag = 'input window, operand 1, single buffered']
    #allocation6 [shape = 's32[1]{0}', space=sflag, size = 0x4, scoped, tag = 'scoped memory for tpu_custom_call.1']
    #allocation7 [shape = 'u8[65536]{0}', space=vmem, size = 0x10000, scoped, tag = 'input window, operand 3, single buffered']
    #allocation8 [shape = 'u8[16384]{0}', space=vmem, size = 0x4000, scoped, tag = 'input window, operand 5']
    #allocation9 [shape = 's32[2]{0}', space=sflag, size = 0x8, scoped, tag = 'scoped memory for tpu_custom_call.1']
    #allocation10 [shape = 'u8[49152]{0}', space=vmem, size = 0xc000, scoped, tag = 'output window, operand 0']
    #allocation11 [shape = 'u8[8192]{0}', space=vmem, size = 0x2000, scoped, tag = 'output window, operand 1']
    #allocation12 [shape = 's32[2]{0}', space=sflag, size = 0x8, scoped, tag = 'scoped memory for tpu_custom_call.1']
    %13 = vsyncpa [#allocation3], 0
    %s14 = scalar_lea.sflag [#allocation3], 1
    %15 = vsyncpa %s14, 0
    %16 = vsyncpa [#allocation6], 0
    %17 = vsyncpa [#allocation9], 0
    %s18 = scalar_lea.sflag [#allocation9], 1
    %19 = vsyncpa %s18, 0
    %20 = vsyncpa [#allocation4], 0
    %s21 = scalar_lea.sflag [#allocation4], 1
    %22 = vsyncpa %s21, 0
    %23 = vsyncpa [#allocation12], 0
    %s24 = scalar_lea.sflag [#allocation12], 1
    %25 = vsyncpa %s24, 0
    loop: start=0, step=1, limit=4
    $region2: #{tpu_custom_call.1} parent=1 // loop_pre_header
      _
    $region3: #{tpu_custom_call.1} parent=1 // loop_header
      %s27 = sphi 0, %s31
      %p28 = scmp.ge.s32.totalorder %s27, 4
      %s37 = sphi 0, %s39
      %s40 = sphi 0, %s37
      %s41 = sphi 0, %s40
      %s57 = sphi 0, %s41
      %s61 = sphi 0, %s61
      %s63 = sphi 0, %s61
      %s64 = sphi 0, %s63
      %s78 = sphi 0, %s64
      %s82 = sphi 0, %s82
      %s84 = sphi 0, %s82
      %s85 = sphi 0, %s84
      %s99 = sphi 0, %s85
      %s103 = sphi 0, %s103
      %s105 = sphi 0, %s103
      %s106 = sphi 0, %s105
      %s120 = sphi 0, %s106
      %s124 = sphi 0, %s124
      %s126 = sphi 0, %s124
      %s127 = sphi 0, %s126
      %s141 = sphi 0, %s127
      %s147 = sphi 0, %s149
      %s150 = sphi 0, %s147
      %s151 = sphi 0, %s150
      %s167 = sphi 0, %s151
      %s173 = sphi 0, %s175
      %s176 = sphi 0, %s173
      %s177 = sphi 0, %s176
      %s193 = sphi 0, %s177
      %s199 = sphi 0, %s201
      %s202 = sphi 0, %s199
      %s203 = sphi 0, %s202
      %s219 = sphi 0, %s203
    $region4: #{tpu_custom_call.1} parent=1 // loop_header_branch
      %30 = sbr.rel (%p28) target = $region8
    $region5: #{tpu_custom_call.1} parent=1 // loop_body
      %s32 = ssub.s32 %s27, 1
      %s33 = ssub.s32 %s27, 2
      %s34 = sadd.s32 %s27, 1
      %s35 = ssub.s32 %s27, %s34
      %p36 = scmp.eq.s32.totalorder %s35, 0
      %s38 = sadd.s32 %s37, 1
      %s39 = scalar_select %p36, %s37, %s38
      %p42 = pneg %p36
      %p43 = scmp.eq.s32.totalorder %s27, 1
      %p44 = por %p42, %p43
      %p45 = scmp.ne.s32.totalorder %s37, %s40
      %p46 = scmp.eq.s32.totalorder %s27, 0
      %p47 = por %p45, %p46
      %p48 = scmp.ne.s32.totalorder %s37, %s40
      %p49 = scmp.eq.s32.totalorder %s32, 1
      %p50 = por %p48, %p49
      %p51 = scmp.ne.s32.totalorder %s40, %s41
      %p52 = scmp.eq.s32.totalorder %s32, 0
      %p53 = por %p51, %p52
      %p54 = scmp.ne.s32.totalorder %s40, %s41
      %p55 = scmp.eq.s32.totalorder %s33, 1
      %p56 = por %p54, %p55
      %p58 = scmp.ne.s32.totalorder %s41, %s57
      %p59 = scmp.eq.s32.totalorder %s33, 0
      %p60 = por %p58, %p59
      %s62 = sadd.s32 %s61, 1
      %p65 = scmp.eq.s32.totalorder %s27, 1
      %p66 = scmp.ne.s32.totalorder %s61, %s63
      %p67 = scmp.eq.s32.totalorder %s27, 0
      %p68 = por %p66, %p67
      %p69 = scmp.ne.s32.totalorder %s61, %s63
      %p70 = scmp.eq.s32.totalorder %s32, 1
      %p71 = por %p69, %p70
      %p72 = scmp.ne.s32.totalorder %s63, %s64
      %p73 = scmp.eq.s32.totalorder %s32, 0
      %p74 = por %p72, %p73
      %p75 = scmp.ne.s32.totalorder %s63, %s64
      %p76 = scmp.eq.s32.totalorder %s33, 1
      %p77 = por %p75, %p76
      %p79 = scmp.ne.s32.totalorder %s64, %s78
      %p80 = scmp.eq.s32.totalorder %s33, 0
      %p81 = por %p79, %p80
      %s83 = sadd.s32 %s82, 1
      %p86 = scmp.eq.s32.totalorder %s27, 1
      %p87 = scmp.ne.s32.totalorder %s82, %s84
      %p88 = scmp.eq.s32.totalorder %s27, 0
      %p89 = por %p87, %p88
      %p90 = scmp.ne.s32.totalorder %s82, %s84
      %p91 = scmp.eq.s32.totalorder %s32, 1
      %p92 = por %p90, %p91
      %p93 = scmp.ne.s32.totalorder %s84, %s85
      %p94 = scmp.eq.s32.totalorder %s32, 0
      %p95 = por %p93, %p94
      %p96 = scmp.ne.s32.totalorder %s84, %s85
      %p97 = scmp.eq.s32.totalorder %s33, 1
      %p98 = por %p96, %p97
      %p100 = scmp.ne.s32.totalorder %s85, %s99
      %p101 = scmp.eq.s32.totalorder %s33, 0
      %p102 = por %p100, %p101
      %s104 = sadd.s32 %s103, 1
      %p107 = scmp.eq.s32.totalorder %s27, 1
      %p108 = scmp.ne.s32.totalorder %s103, %s105
      %p109 = scmp.eq.s32.totalorder %s27, 0
      %p110 = por %p108, %p109
      %p111 = scmp.ne.s32.totalorder %s103, %s105
      %p112 = scmp.eq.s32.totalorder %s32, 1
      %p113 = por %p111, %p112
      %p114 = scmp.ne.s32.totalorder %s105, %s106
      %p115 = scmp.eq.s32.totalorder %s32, 0
      %p116 = por %p114, %p115
      %p117 = scmp.ne.s32.totalorder %s105, %s106
      %p118 = scmp.eq.s32.totalorder %s33, 1
      %p119 = por %p117, %p118
      %p121 = scmp.ne.s32.totalorder %s106, %s120
      %p122 = scmp.eq.s32.totalorder %s33, 0
      %p123 = por %p121, %p122
      %s125 = sadd.s32 %s124, 1
      %p128 = scmp.eq.s32.totalorder %s27, 1
      %p129 = scmp.ne.s32.totalorder %s124, %s126
      %p130 = scmp.eq.s32.totalorder %s27, 0
      %p131 = por %p129, %p130
      %p132 = scmp.ne.s32.totalorder %s124, %s126
      %p133 = scmp.eq.s32.totalorder %s32, 1
      %p134 = por %p132, %p133
      %p135 = scmp.ne.s32.totalorder %s126, %s127
      %p136 = scmp.eq.s32.totalorder %s32, 0
      %p137 = por %p135, %p136
      %p138 = scmp.ne.s32.totalorder %s126, %s127
      %p139 = scmp.eq.s32.totalorder %s33, 1
      %p140 = por %p138, %p139
      %p142 = scmp.ne.s32.totalorder %s127, %s141
      %p143 = scmp.eq.s32.totalorder %s33, 0
      %p144 = por %p142, %p143
      %s145 = ssub.s32 %s27, %s34
      %p146 = scmp.eq.s32.totalorder %s145, 0
      %s148 = sadd.s32 %s147, 1
      %s149 = scalar_select %p146, %s147, %s148
      %p152 = pneg %p146
      %p153 = scmp.eq.s32.totalorder %s27, 1
      %p154 = por %p152, %p153
      %p155 = scmp.ne.s32.totalorder %s147, %s150
      %p156 = scmp.eq.s32.totalorder %s27, 0
      %p157 = por %p155, %p156
      %p158 = scmp.ne.s32.totalorder %s147, %s150
      %p159 = scmp.eq.s32.totalorder %s32, 1
      %p160 = por %p158, %p159
      %p161 = scmp.ne.s32.totalorder %s150, %s151
      %p162 = scmp.eq.s32.totalorder %s32, 0
      %p163 = por %p161, %p162
      %p164 = scmp.ne.s32.totalorder %s150, %s151
      %p165 = scmp.eq.s32.totalorder %s33, 1
      %p166 = por %p164, %p165
      %p168 = scmp.ne.s32.totalorder %s151, %s167
      %p169 = scmp.eq.s32.totalorder %s33, 0
      %p170 = por %p168, %p169
      %s171 = ssub.s32 %s27, %s34
      %p172 = scmp.eq.s32.totalorder %s171, 0
      %s174 = sadd.s32 %s173, 1
      %s175 = scalar_select %p172, %s173, %s174
      %p178 = pneg %p172
      %p179 = scmp.eq.s32.totalorder %s27, 1
      %p180 = por %p178, %p179
      %p181 = scmp.ne.s32.totalorder %s173, %s176
      %p182 = scmp.eq.s32.totalorder %s27, 0
      %p183 = por %p181, %p182
      %p184 = scmp.ne.s32.totalorder %s173, %s176
      %p185 = scmp.eq.s32.totalorder %s32, 1
      %p186 = por %p184, %p185
      %p187 = scmp.ne.s32.totalorder %s176, %s177
      %p188 = scmp.eq.s32.totalorder %s32, 0
      %p189 = por %p187, %p188
      %p190 = scmp.ne.s32.totalorder %s176, %s177
      %p191 = scmp.eq.s32.totalorder %s33, 1
      %p192 = por %p190, %p191
      %p194 = scmp.ne.s32.totalorder %s177, %s193
      %p195 = scmp.eq.s32.totalorder %s33, 0
      %p196 = por %p194, %p195
      %s197 = ssub.s32 %s27, %s34
      %p198 = scmp.eq.s32.totalorder %s197, 0
      %s200 = sadd.s32 %s199, 1
      %s201 = scalar_select %p198, %s199, %s200
      %p204 = pneg %p198
      %p205 = scmp.eq.s32.totalorder %s27, 1
      %p206 = por %p204, %p205
      %p207 = scmp.ne.s32.totalorder %s199, %s202
      %p208 = scmp.eq.s32.totalorder %s27, 0
      %p209 = por %p207, %p208
      %p210 = scmp.ne.s32.totalorder %s199, %s202
      %p211 = scmp.eq.s32.totalorder %s32, 1
      %p212 = por %p210, %p211
      %p213 = scmp.ne.s32.totalorder %s202, %s203
      %p214 = scmp.eq.s32.totalorder %s32, 0
      %p215 = por %p213, %p214
      %p216 = scmp.ne.s32.totalorder %s202, %s203
      %p217 = scmp.eq.s32.totalorder %s33, 1
      %p218 = por %p216, %p217
      %p220 = scmp.ne.s32.totalorder %s203, %s219
      %p221 = scmp.eq.s32.totalorder %s33, 0
      %p222 = por %p220, %p221
      %p223 = scmp.le.s32.totalorder 1, %s27
      %p224 = scmp.lt.s32.totalorder %s27, 3
      %p225 = pnand %p223, %p224
      %p226 = pneg %p225
      // Predicated region
      $region9: #{tpu_custom_call.1} parent=5 // pred_check
        _
      $region10: #{tpu_custom_call.1} parent=5 // pred_check_branch
        %228 = sbr.rel (%p225) target = $region12
      $region11: #{tpu_custom_call.1} parent=5 // pred_region
        %s229 = ssub.s32 %s27, 1
        // Predicated region
        $region13: #{tpu_custom_call.1} parent=11 // pred_check
          %p230 = pneg %p74
        $region14: #{tpu_custom_call.1} parent=11 // pred_check_branch
          %232 = sbr.rel (%p230) target = $region16
        $region15: #{tpu_custom_call.1} parent=11 // pred_region
          %234 = vsyncadd [#allocation6], 0
          %s235 = sshll.u32 %s1, 4
          %s236 = int_to_ptr.hbm [resolvable:$true] %s235
          %s237 = sshll.u32 [#allocation5], 4
          %s238 = int_to_ptr.vmem [resolvable:$true] %s237
          %243 = dma.hbm_to_vmem [thread:$0]  %s236, 256, %s238, [#allocation6], 64, 64, 4
        $region16: #{tpu_custom_call.1} parent=11 // pred_fallthru
          _
        // Predicated region
        $region17: #{tpu_custom_call.1} parent=11 // pred_check
          %p244 = pneg %p95
        $region18: #{tpu_custom_call.1} parent=11 // pred_check_branch
          %246 = sbr.rel (%p244) target = $region20
        $region19: #{tpu_custom_call.1} parent=11 // pred_region
          _
        $region20: #{tpu_custom_call.1} parent=11 // pred_fallthru
          _
        // Predicated region
        $region21: #{tpu_custom_call.1} parent=11 // pred_check
          %p247 = pneg %p116
        $region22: #{tpu_custom_call.1} parent=11 // pred_check_branch
          %249 = sbr.rel (%p247) target = $region24
        $region23: #{tpu_custom_call.1} parent=11 // pred_region
          %251 = vsyncadd [#allocation6], 0
          %s252 = sshll.u32 %s3, 4
          %s253 = int_to_ptr.hbm [resolvable:$true] %s252
          %s254 = sshll.u32 [#allocation7], 4
          %s255 = int_to_ptr.vmem [resolvable:$true] %s254
          %260 = dma.hbm_to_vmem [thread:$0]  %s253, 2048, %s255, [#allocation6], 128, 128, 8
        $region24: #{tpu_custom_call.1} parent=11 // pred_fallthru
          _
        // Predicated region
        $region25: #{tpu_custom_call.1} parent=11 // pred_check
          %p261 = pneg %p137
        $region26: #{tpu_custom_call.1} parent=11 // pred_check_branch
          %263 = sbr.rel (%p261) target = $region28
        $region27: #{tpu_custom_call.1} parent=11 // pred_region
          _
        $region28: #{tpu_custom_call.1} parent=11 // pred_fallthru
          _
      $region12: #{tpu_custom_call.1} parent=5 // pred_fallthru
        _
      %p264 = scmp.lt.s32.totalorder %s27, 2
      // Predicated region
      $region29: #{tpu_custom_call.1} parent=5 // pred_check
        %p265 = pneg %p264
      $region30: #{tpu_custom_call.1} parent=5 // pred_check_branch
        %267 = sbr.rel (%p265) target = $region32
      $region31: #{tpu_custom_call.1} parent=5 // pred_region
        // Predicated region
        $region33: #{tpu_custom_call.1} parent=31 // pred_check
          %p268 = pneg %p47
        $region34: #{tpu_custom_call.1} parent=31 // pred_check_branch
          %270 = sbr.rel (%p268) target = $region36
        $region35: #{tpu_custom_call.1} parent=31 // pred_region
          %s271 = sand.u32 %s37, 1
          %s272 = scalar_lea.sflag [#allocation3], %s271
          %s273 = sand.u32 %s37, 1
          %s274 = smul.addr %s273, 8
          %s275 = scalar_lea.vmem [#allocation2], %s274
          %s276 = smul.u32 2, %s27
          %278 = vsyncadd %s272, 0
          %s279 = smul.addr %s276, 4
          %s280 = scalar_lea.hbm %s0, %s279
          %s281 = sshll.u32 %s280, 4
          %s282 = int_to_ptr.hbm [resolvable:$true] %s281
          %s283 = sshll.u32 %s275, 4
          %s284 = int_to_ptr.vmem [resolvable:$true] %s283
          %289 = dma.hbm_to_vmem [thread:$0]  %s282, 128, %s284, %s272, 64, 64, 4
        $region36: #{tpu_custom_call.1} parent=31 // pred_fallthru
          _
        // Predicated region
        $region37: #{tpu_custom_call.1} parent=31 // pred_check
          %p290 = pneg %p157
        $region38: #{tpu_custom_call.1} parent=31 // pred_check_branch
          %292 = sbr.rel (%p290) target = $region40
        $region39: #{tpu_custom_call.1} parent=31 // pred_region
          %s293 = sand.u32 %s147, 1
          %s294 = scalar_lea.sflag [#allocation9], %s293
          %s295 = sand.u32 %s147, 1
          %s296 = smul.addr %s295, 16
          %s297 = scalar_lea.vmem [#allocation8], %s296
          %s298 = smul.u32 2, %s27
          %300 = vsyncadd %s294, 0
          %s301 = smul.addr %s298, 8
          %s302 = scalar_lea.hbm %s5, %s301
          %s303 = sshll.u32 %s302, 4
          %s304 = int_to_ptr.hbm [resolvable:$true] %s303
          %s305 = sshll.u32 %s297, 4
          %s306 = int_to_ptr.vmem [resolvable:$true] %s305
          %311 = dma.hbm_to_vmem [thread:$0]  %s304, 256, %s306, %s294, 128, 128, 8
        $region40: #{tpu_custom_call.1} parent=31 // pred_fallthru
          _
      $region32: #{tpu_custom_call.1} parent=5 // pred_fallthru
        _
      %p312 = scmp.le.s32.totalorder 1, %s27
      %p313 = scmp.lt.s32.totalorder %s27, 3
      %p314 = pnand %p312, %p313
      %p315 = pneg %p314
      // Predicated region
      $region41: #{tpu_custom_call.1} parent=5 // pred_check
        _
      $region42: #{tpu_custom_call.1} parent=5 // pred_check_branch
        %317 = sbr.rel (%p314) target = $region44
      $region43: #{tpu_custom_call.1} parent=5 // pred_region
        %s318 = ssub.s32 %s27, 1
        %s319 = sand.u32 %s40, 1
        %s320 = scalar_lea.sflag [#allocation3], %s319
        %s321 = sand.u32 %s40, 1
        %s322 = smul.addr %s321, 8
        %s323 = scalar_lea.vmem [#allocation2], %s322
        // Predicated region
        $region45: #{tpu_custom_call.1} parent=43 // pred_check
          %p324 = pneg %p53
        $region46: #{tpu_custom_call.1} parent=43 // pred_check_branch
          %326 = sbr.rel (%p324) target = $region48
        $region47: #{tpu_custom_call.1} parent=43 // pred_region
          %328 = dma.done %s320, 128
        $region48: #{tpu_custom_call.1} parent=43 // pred_fallthru
          _
        // Predicated region
        $region49: #{tpu_custom_call.1} parent=43 // pred_check
          %p329 = pneg %p74
        $region50: #{tpu_custom_call.1} parent=43 // pred_check_branch
          %331 = sbr.rel (%p329) target = $region52
        $region51: #{tpu_custom_call.1} parent=43 // pred_region
          %333 = dma.done [#allocation6], 256
        $region52: #{tpu_custom_call.1} parent=43 // pred_fallthru
          _
        // Predicated region
        $region53: #{tpu_custom_call.1} parent=43 // pred_check
          %p334 = pneg %p116
        $region54: #{tpu_custom_call.1} parent=43 // pred_check_branch
          %336 = sbr.rel (%p334) target = $region56
        $region55: #{tpu_custom_call.1} parent=43 // pred_region
          %338 = dma.done [#allocation6], 2048
        $region56: #{tpu_custom_call.1} parent=43 // pred_fallthru
          _
        %s339 = sand.u32 %s150, 1
        %s340 = scalar_lea.sflag [#allocation9], %s339
        %s341 = sand.u32 %s150, 1
        %s342 = smul.addr %s341, 16
        %s343 = scalar_lea.vmem [#allocation8], %s342
        // Predicated region
        $region57: #{tpu_custom_call.1} parent=43 // pred_check
          %p344 = pneg %p163
        $region58: #{tpu_custom_call.1} parent=43 // pred_check_branch
          %346 = sbr.rel (%p344) target = $region60
        $region59: #{tpu_custom_call.1} parent=43 // pred_region
          %348 = dma.done %s340, 256
        $region60: #{tpu_custom_call.1} parent=43 // pred_fallthru
          _
        %s349 = sand.u32 %s40, 1
        %s350 = scalar_lea.sflag [#allocation3], %s349
        %s351 = sand.u32 %s40, 1
        %s352 = smul.addr %s351, 8
        %s353 = scalar_lea.vmem [#allocation2], %s352
        %p354 = pneg %p53
        %p355 = pneg %p50
        %p356 = pneg %p74
        %p357 = pneg %p71
        %p358 = pneg %p95
        %p359 = pneg %p92
        %p360 = pneg %p116
        %p361 = pneg %p113
        %p362 = pneg %p137
        %p363 = pneg %p134
        %s364 = sand.u32 %s150, 1
        %s365 = scalar_lea.sflag [#allocation9], %s364
        %s366 = sand.u32 %s150, 1
        %s367 = smul.addr %s366, 16
        %s368 = scalar_lea.vmem [#allocation8], %s367
        %p369 = pneg %p163
        %p370 = pneg %p160
        %p371 = pneg %p189
        %p372 = pneg %p186
        %s373 = sand.u32 %s176, 1
        %s374 = scalar_lea.sflag [#allocation4], %s373
        %s375 = sand.u32 %s176, 1
        %s376 = smul.addr %s375, 48
        %s377 = scalar_lea.vmem [#allocation10], %s376
        %p378 = pneg %p215
        %p379 = pneg %p212
        %s380 = sand.u32 %s202, 1
        %s381 = scalar_lea.sflag [#allocation12], %s380
        %s382 = sand.u32 %s202, 1
        %s383 = smul.addr %s382, 8
        %s384 = scalar_lea.vmem [#allocation11], %s383
        %s385 = smul.u32 2, %s32
        %s386 = smul.u32 2, %s32
        %s387 = smul.u32 2, %s32
        %v389 = vld [vmem:[%s323] sm:$0xf]
        %v390 = vld [vmem:[%s323 + $0x4] sm:$0xf]
        %v391 = vld [vmem:[#allocation5] sm:$0xf]
        %v392 = vld [vmem:[#allocation5 + $0x4] sm:$0xf]
        %v393 = vld [vmem:[#allocation5 + $0x8] sm:$0xf]
        %v394 = vld [vmem:[#allocation5 + $0xc] sm:$0xf]
        %v395 = vld [vmem:[%s2] sm:$0x1]
        %v397 = vperm.slane %v395, 0
        %v401 = vunpack.c.l.b16 %v389
        %v402 = vunpack.c.l.b16 %v390
        %v403 = vpack.c.b16 %v402, %v401
        %v408 = vunpack.c.l.b16 %v391
        %v409 = vunpack.c.l.b16 %v392
        %v410 = vunpack.c.l.b16 %v393
        %v411 = vunpack.c.l.b16 %v394
        %v412 = vpack.c.b16 %v409, %v408
        %v413 = vpack.c.b16 %v411, %v410
        %vm416 = vcmask 261120
        %v418 = vsel %vm416, %v403, 0
        %420 = vmatpush.bf16.msra.mxu0 0
        %421 = vmatpush.bf16.msra.mxu0 0
        %422 = vmatpush.bf16.msra.mxu0 0
        %423 = vmatpush.bf16.msra.mxu0 0
        %424 = vmatpush.bf16.msra.mxu0 0
        %425 = vmatpush.bf16.msra.mxu0 0
        %426 = vmatpush.bf16.msra.mxu0 %v413
        %427 = vmatpush.bf16.msra.mxu0 %v412
        %428 = vmatmul.bf16.gmra.mxu0 %v418
        %v429 = vpop.f32.mrf.mxu0
        %v430 = vadd.f32 %v397, %v429
        %v431 = vpop.f32.mrf.mxu0
        %v432 = vadd.f32 %v397, %v431
        %433 = vdwg.mxu0
        %v434 = vmax.f32 %v430, 0.0
        %v435 = vmax.f32 %v432, 0.0
        %v436 = vpack.c.bf16 %v435, %v434
        %v437 = vld [vmem:[#allocation7] sm:$0xff]
        %v438 = vld [vmem:[#allocation7 + $0x8] sm:$0xff]
        %v439 = vld [vmem:[#allocation7 + $0x10] sm:$0xff]
        %v440 = vld [vmem:[#allocation7 + $0x18] sm:$0xff]
        %v441 = vld [vmem:[#allocation7 + $0x20] sm:$0xff]
        %v442 = vld [vmem:[#allocation7 + $0x28] sm:$0xff]
        %v443 = vld [vmem:[#allocation7 + $0x30] sm:$0xff]
        %v444 = vld [vmem:[#allocation7 + $0x38] sm:$0xff]
        %v445 = vld [vmem:[#allocation7 + $0x40] sm:$0xff]
        %v446 = vld [vmem:[#allocation7 + $0x48] sm:$0xff]
        %v447 = vld [vmem:[#allocation7 + $0x50] sm:$0xff]
        %v448 = vld [vmem:[#allocation7 + $0x58] sm:$0xff]
        %v449 = vld [vmem:[#allocation7 + $0x60] sm:$0xff]
        %v450 = vld [vmem:[#allocation7 + $0x68] sm:$0xff]
        %v451 = vld [vmem:[#allocation7 + $0x70] sm:$0xff]
        %v452 = vld [vmem:[#allocation7 + $0x78] sm:$0xff]
        %v453 = vld [vmem:[%s4] sm:$0x3]
        %v455 = vperm.slane %v453, 0
        %v456 = vperm.slane %v453, 1
        %v475 = vunpack.c.l.b16 %v437
        %v476 = vunpack.c.h.b16 %v437
        %v477 = vunpack.c.l.b16 %v438
        %v478 = vunpack.c.h.b16 %v438
        %v479 = vunpack.c.l.b16 %v439
        %v480 = vunpack.c.h.b16 %v439
        %v481 = vunpack.c.l.b16 %v440
        %v482 = vunpack.c.h.b16 %v440
        %v483 = vunpack.c.l.b16 %v441
        %v484 = vunpack.c.h.b16 %v441
        %v485 = vunpack.c.l.b16 %v442
        %v486 = vunpack.c.h.b16 %v442
        %v487 = vunpack.c.l.b16 %v443
        %v488 = vunpack.c.h.b16 %v443
        %v489 = vunpack.c.l.b16 %v444
        %v490 = vunpack.c.h.b16 %v444
        %v491 = vunpack.c.l.b16 %v445
        %v492 = vunpack.c.h.b16 %v445
        %v493 = vunpack.c.l.b16 %v446
        %v494 = vunpack.c.h.b16 %v446
        %v495 = vunpack.c.l.b16 %v447
        %v496 = vunpack.c.h.b16 %v447
        %v497 = vunpack.c.l.b16 %v448
        %v498 = vunpack.c.h.b16 %v448
        %v499 = vunpack.c.l.b16 %v449
        %v500 = vunpack.c.h.b16 %v449
        %v501 = vunpack.c.l.b16 %v450
        %v502 = vunpack.c.h.b16 %v450
        %v503 = vunpack.c.l.b16 %v451
        %v504 = vunpack.c.h.b16 %v451
        %v505 = vunpack.c.l.b16 %v452
        %v506 = vunpack.c.h.b16 %v452
        %v507 = vpack.c.b16 %v477, %v475
        %v508 = vpack.c.b16 %v478, %v476
        %v509 = vpack.c.b16 %v481, %v479
        %v510 = vpack.c.b16 %v482, %v480
        %v511 = vpack.c.b16 %v485, %v483
        %v512 = vpack.c.b16 %v486, %v484
        %v513 = vpack.c.b16 %v489, %v487
        %v514 = vpack.c.b16 %v490, %v488
        %v515 = vpack.c.b16 %v493, %v491
        %v516 = vpack.c.b16 %v494, %v492
        %v517 = vpack.c.b16 %v497, %v495
        %v518 = vpack.c.b16 %v498, %v496
        %v519 = vpack.c.b16 %v501, %v499
        %v520 = vpack.c.b16 %v502, %v500
        %v521 = vpack.c.b16 %v505, %v503
        %v522 = vpack.c.b16 %v506, %v504
        %539 = vmatpush.bf16.msra.mxu0 %v521
        %540 = vmatpush.bf16.msra.mxu0 %v519
        %541 = vmatpush.bf16.msra.mxu0 %v517
        %542 = vmatpush.bf16.msra.mxu0 %v515
        %543 = vmatpush.bf16.msra.mxu0 %v513
        %544 = vmatpush.bf16.msra.mxu0 %v511
        %545 = vmatpush.bf16.msra.mxu0 %v509
        %546 = vmatpush.bf16.msra.mxu0 %v507
        %547 = vmatmul.bf16.gmra.mxu0 %v436
        %v548 = vpop.f32.mrf.mxu0
        %v549 = vadd.f32 %v455, %v548
        %v550 = vpop.f32.mrf.mxu0
        %v551 = vadd.f32 %v455, %v550
        %552 = vdwg.mxu0
        %553 = vmatpush.bf16.msra.mxu0 %v522
        %554 = vmatpush.bf16.msra.mxu0 %v520
        %555 = vmatpush.bf16.msra.mxu0 %v518
        %556 = vmatpush.bf16.msra.mxu0 %v516
        %557 = vmatpush.bf16.msra.mxu0 %v514
        %558 = vmatpush.bf16.msra.mxu0 %v512
        %559 = vmatpush.bf16.msra.mxu0 %v510
        %560 = vmatpush.bf16.msra.mxu0 %v508
        %561 = vmatmul.bf16.gmra.mxu0 %v436
        %v562 = vpop.f32.mrf.mxu0
        %v563 = vadd.f32 %v456, %v562
        %v564 = vpop.f32.mrf.mxu0
        %v565 = vadd.f32 %v456, %v564
        %566 = vdwg.mxu0
        %v567 = vmul.f32 %v563, 0.5
        %v568 = vmul.f32 %v565, 0.5
        %v569 = vmul.f32 %v567, 1.442695
        %v570 = vpow.pop %v569
        %v571 = vmul.f32 %v568, 1.442695
        %v572 = vpow.pop %v571
        %v573 = vld [vmem:[%s343] sm:$0xff]
        %v574 = vld [vmem:[%s343 + $0x8] sm:$0xff]
        %v575 = vmul.f32 %v573, %v570
        %v576 = vmul.f32 %v574, %v572
        %v577 = vadd.f32 %v575, %v549
        %v578 = vadd.f32 %v576, %v551
        %v579 = vadd.f32 %v563, 1.0
        %v580 = vadd.f32 %v565, 1.0
        %v581 = vmul.f32 %v549, %v549
        %v582 = vmul.f32 %v551, %v551
        %v583 = vsub.f32 %v579, %v581
        %v584 = vsub.f32 %v580, %v582
        %v585 = vmul.f32 %v570, %v570
        %v586 = vmul.f32 %v572, %v572
        %v587 = vsub.f32 %v583, %v585
        %v588 = vsub.f32 %v584, %v586
        %v589 = vmul.f32 %v587, -0.5
        %v590 = vmul.f32 %v588, -0.5
        %s591 = smul.u32 %s32, 16
        %v592 = vlaneseq
        %v593 = vshrl.u32 %v592, 7
        %v594 = vadd.s32 %v593, 8
        %v595 = vstv %s591
        %v596 = vadd.s32 %v593, %v595
        %v597 = vadd.s32 %v594, %v595
        %vm598 = vcmp.lt.s32.totalorder %v596, 20
        %vm599 = vcmp.lt.s32.totalorder %v597, 20
        %v600 = vsel %vm598, 1, 0
        %v601 = vsel %vm599, 1, 0
        %vm602 = vcmp.eq.s32.totalorder %v600, 1
        %vm603 = vcmp.eq.s32.totalorder %v601, 1
        %v604 = vsel %vm602, %v589, 0.0
        %v605 = vsel %vm603, %v590, 0.0
        %v606 = vadd.f32 %v604, %v605
        %607 = vadd.xlane.f32.xlu0 %v606
        %v608 = vpop.xlane.xlu0 %607
        %v609 = vrot.slane %v608, 4
        %v610 = vadd.f32 %v608, %v609
        %v611 = vrot.slane %v610, 2
        %v612 = vadd.f32 %v610, %v611
        %v613 = vrot.slane %v612, 1
        %v614 = vadd.f32 %v612, %v613
        %s615 = vtos %v614
        %616 = vst [vmem:[%s377] sm:$0xff] %v549
        %617 = vst [vmem:[%s377 + $0x18] sm:$0xff] %v551
        %618 = vst [vmem:[%s377 + $0x8] sm:$0xff] %v563
        %619 = vst [vmem:[%s377 + $0x20] sm:$0xff] %v565
        %620 = vst [vmem:[%s377 + $0x10] sm:$0xff] %v577
        %621 = vst [vmem:[%s377 + $0x28] sm:$0xff] %v578
        %v622 = vstv %s615
        %623 = vst [vmem:[%s384] sm:$0xff] %v622
        %s624 = sand.u32 %s176, 1
        %s625 = scalar_lea.sflag [#allocation4], %s624
        %s626 = sand.u32 %s176, 1
        %s627 = smul.addr %s626, 48
        %s628 = scalar_lea.vmem [#allocation10], %s627
        %s629 = sand.u32 %s202, 1
        %s630 = scalar_lea.sflag [#allocation12], %s629
        %s631 = sand.u32 %s202, 1
        %s632 = smul.addr %s631, 8
        %s633 = scalar_lea.vmem [#allocation11], %s632
        // Predicated region
        $region61: #{tpu_custom_call.1} parent=43 // pred_check
          %p634 = pneg %p186
        $region62: #{tpu_custom_call.1} parent=43 // pred_check_branch
          %636 = sbr.rel (%p634) target = $region64
        $region63: #{tpu_custom_call.1} parent=43 // pred_region
          %s637 = smul.u32 2, %s32
          %639 = vsyncadd %s625, 0
          %s640 = smul.addr %s637, 3
          %s641 = smul.addr %s640, 8
          %s642 = scalar_lea.hbm %s6, %s641
          %s643 = sshll.u32 %s628, 4
          %s644 = int_to_ptr.vmem [resolvable:$true] %s643
          %s645 = sshll.u32 %s642, 4
          %s646 = int_to_ptr.hbm [resolvable:$true] %s645
          %651 = dma.vmem_to_hbm [thread:$0]  %s644, 768, %s646, %s625, 384, 384, 24
        $region64: #{tpu_custom_call.1} parent=43 // pred_fallthru
          _
        // Predicated region
        $region65: #{tpu_custom_call.1} parent=43 // pred_check
          %p652 = pneg %p212
        $region66: #{tpu_custom_call.1} parent=43 // pred_check_branch
          %654 = sbr.rel (%p652) target = $region68
        $region67: #{tpu_custom_call.1} parent=43 // pred_region
          %656 = vsyncadd %s630, 0
          %s657 = smul.addr %s32, 8
          %s658 = scalar_lea.hbm %s7, %s657
          %s660 = sshll.u32 %s633, 4
          %s661 = int_to_ptr.vmem [resolvable:$true] %s660
          %s662 = sshll.u32 %s658, 4
          %s663 = int_to_ptr.hbm [resolvable:$true] %s662
          %665 = dma.vmem_to_hbm [thread:$0]  %s661, 128, %s663, %s630
        $region68: #{tpu_custom_call.1} parent=43 // pred_fallthru
          _
      $region44: #{tpu_custom_call.1} parent=5 // pred_fallthru
        _
      %p666 = scmp.le.s32.totalorder 2, %s27
      // Predicated region
      $region69: #{tpu_custom_call.1} parent=5 // pred_check
        %p667 = pneg %p666
      $region70: #{tpu_custom_call.1} parent=5 // pred_check_branch
        %669 = sbr.rel (%p667) target = $region72
      $region71: #{tpu_custom_call.1} parent=5 // pred_region
        %s670 = ssub.s32 %s27, 2
        // Predicated region
        $region73: #{tpu_custom_call.1} parent=71 // pred_check
          %p671 = pneg %p192
        $region74: #{tpu_custom_call.1} parent=71 // pred_check_branch
          %673 = sbr.rel (%p671) target = $region76
        $region75: #{tpu_custom_call.1} parent=71 // pred_region
          %s674 = sand.u32 %s177, 1
          %s675 = scalar_lea.sflag [#allocation4], %s674
          %s676 = sand.u32 %s177, 1
          %s677 = smul.addr %s676, 48
          %s678 = scalar_lea.vmem [#allocation10], %s677
          %680 = dma.done %s675, 768
        $region76: #{tpu_custom_call.1} parent=71 // pred_fallthru
          _
        // Predicated region
        $region77: #{tpu_custom_call.1} parent=71 // pred_check
          %p681 = pneg %p218
        $region78: #{tpu_custom_call.1} parent=71 // pred_check_branch
          %683 = sbr.rel (%p681) target = $region80
        $region79: #{tpu_custom_call.1} parent=71 // pred_region
          %s684 = sand.u32 %s203, 1
          %s685 = scalar_lea.sflag [#allocation12], %s684
          %s686 = sand.u32 %s203, 1
          %s687 = smul.addr %s686, 8
          %s688 = scalar_lea.vmem [#allocation11], %s687
          %690 = dma.done %s685, 128
        $region80: #{tpu_custom_call.1} parent=71 // pred_fallthru
          _
      $region72: #{tpu_custom_call.1} parent=5 // pred_fallthru
        _
    $region6: #{tpu_custom_call.1} parent=1 // loop_footer
      %s31 = sadd.s32 1, %s27
    $region7: #{tpu_custom_call.1} parent=1 // loop_footer_branch
      %26 = sbr.rel target = $region3
    $region8: #{tpu_custom_call.1} parent=1 // loop_exit
      _
    %691 = vsyncpa [#allocation3], 1
    %s692 = scalar_lea.sflag [#allocation3], 1
    %693 = vsyncpa %s692, 1
    %694 = vsyncpa [#allocation6], 1
    %695 = vsyncpa [#allocation9], 1
    %s696 = scalar_lea.sflag [#allocation9], 1
    %697 = vsyncpa %s696, 1
    %698 = vsyncpa [#allocation4], 1
    %s699 = scalar_lea.sflag [#allocation4], 1
    %700 = vsyncpa %s699, 1
    %701 = vsyncpa [#allocation12], 1
    %s702 = scalar_lea.sflag [#allocation12], 1
    %703 = vsyncpa %s702, 1

</llo_original>
